<compile_context>
chip_gen: v7x
topology: tpu7x:2x2x1
jax: 0.10.0
libtpu: 0.0.40
codegen_flags: <defaults>
</compile_context>

<pallas_src>
import jax
import jax.numpy as jnp
import numpy as np
from jax.experimental import pallas as pl
from jax.experimental.pallas import tpu as pltpu  # noqa: F401  (TPU backend)

# ----- module / problem sizes -------------------------------------------------
IN_CH, OUT_CH, KH, KW = 4, 8, 3, 3
B, H, W = 2, 16, 16
HW = H * W                          # 256 conv positions per image (2 x 128 lanes)
PATCH = IN_CH * KH * KW             # 36  (contraction length of the conv)
WSIZE = OUT_CH * PATCH              # 288 weight elements
NPARAM = WSIZE + OUT_CH             # 296 total params (weight + bias)
K_PAD = 40                          # 36 patch + 1 bias row + 3 zero rows (mult. of 8)


# ----------------------------------------------------------------------------
# Kernel: pre-mixed conv params  x  batch-major im2col slab  ->  ReLU output
# ----------------------------------------------------------------------------
def conv_bias_relu_kernel(lhs_ref, a_ref, o_ref):
    # lhs_ref: (OUT_CH, K_PAD)  = [mixed weight rows | bias col | 3 zero cols]
    # a_ref:   (B, K_PAD, HW)   = [patch rows | ones row (bias) | 3 zero rows]
    # o_ref:   (B, OUT_CH, HW)
    lhs = lhs_ref[...]
    # B = 2 static unroll: two lane-dense (8,40) x (40,256) MXU matmuls.
    # The ones row of A adds the bias; the zero pad rows contribute nothing.
    for b in range(B):
        acc = jnp.dot(lhs, a_ref[b], preferred_element_type=jnp.float32)
        o_ref[b] = jnp.maximum(acc, 0.0)


# ----------------------------------------------------------------------------
# GossipDataParallel-equivalent forward (single device -> scatter is identity)
# ----------------------------------------------------------------------------
@jax.jit
def gossip_data_parallel_forward(x, weight, bias, q_buf, xj_hat, xi_hat,
                                 gamma, w_uniform):
    # ---- gossip mix (forward pre-hook), single source of truth, plain jnp ----
    xj_new = xj_hat + q_buf                                    # xj_hat += qj
    r = gamma * (xj_new + (w_uniform - 1.0) * xi_hat)          # qj -> r = gamma*qj
    p_flat = jnp.concatenate([weight.reshape(-1), bias]) + r   # p += r

    # ---- pack mixed params into one (OUT_CH, K_PAD) MXU LHS slab -------------
    w_rows = p_flat[:WSIZE].reshape(OUT_CH, PATCH)             # (8, 36)
    b_col = p_flat[WSIZE:]                                     # (8,)
    lhs = jnp.concatenate(
        [w_rows, b_col[:, None],
         jnp.zeros((OUT_CH, K_PAD - PATCH - 1), p_flat.dtype)], axis=1)  # (8, 40)

    # ---- im2col, batch-major (no transposes anywhere) ------------------------
    patches = jax.lax.conv_general_dilated_patches(
        x, filter_shape=(KH, KW), window_strides=(1, 1),
        padding=((1, 1), (1, 1)))                              # (B, C*KH*KW, H, W)
    a_bt = patches.reshape(B, PATCH, HW)                       # pure reshape
    a_bt = jnp.concatenate(
        [a_bt,
         jnp.ones((B, 1, HW), x.dtype),                        # bias row
         jnp.zeros((B, K_PAD - PATCH - 1, HW), x.dtype)], axis=1)  # (B, 40, 256)

    # ---- single pallas_call, one grid step, everything resident in VMEM ------
    out = pl.pallas_call(
        conv_bias_relu_kernel,
        grid=(1,),
        in_specs=[pl.BlockSpec((OUT_CH, K_PAD), lambda i: (0, 0)),
                  pl.BlockSpec((B, K_PAD, HW), lambda i: (0, 0, 0))],
        out_specs=pl.BlockSpec((B, OUT_CH, HW), lambda i: (0, 0, 0)),
        out_shape=jax.ShapeDtypeStruct((B, OUT_CH, HW), jnp.float32),
    )(lhs, a_bt)

    # batch-major (B, OUT_CH, HW) -> NCHW is a pure reshape
    y = out.reshape(B, OUT_CH, H, W)
    return y, r, xj_new


# ----------------------------------------------------------------------------
if __name__ == "__main__":
    key = jax.random.PRNGKey(0)
    kw_, kb, kx, kq, kxj, kxi = jax.random.split(key, 6)

    weight = jax.random.normal(kw_, (OUT_CH, IN_CH, KH, KW), jnp.float32) * 0.1
    bias = jax.random.normal(kb, (OUT_CH,), jnp.float32) * 0.1
    x = jax.random.normal(kx, (B, IN_CH, H, W), jnp.float32)

    # gossip_device_buffer / neighbor_copy / self_xhat (flattened, weight‖bias)
    q_buf = jax.random.normal(kq, (NPARAM,), jnp.float32) * 0.01
    xj_hat = jax.random.normal(kxj, (NPARAM,), jnp.float32) * 0.01
    xi_hat = jax.random.normal(kxi, (NPARAM,), jnp.float32) * 0.01

    gamma = 1.0        # averaging_rate default
    w_uniform = 0.5    # UniformMixing weight (self + 1 neighbor)

    y, q_new, xj_new = gossip_data_parallel_forward(
        x, weight, bias, q_buf, xj_hat, xi_hat, gamma, w_uniform)
    y = jax.block_until_ready(y)

    # ---- pure-JAX reference check -------------------------------------------
    r_ref = gamma * (xj_hat + q_buf + (w_uniform - 1.0) * xi_hat)
    p_ref = jnp.concatenate([weight.ravel(), bias.ravel()]) + r_ref
    w_ref = p_ref[:WSIZE].reshape(OUT_CH, IN_CH, KH, KW)
    b_ref = p_ref[WSIZE:]
    y_ref = jax.lax.conv_general_dilated(
        x, w_ref, window_strides=(1, 1), padding=((1, 1), (1, 1)),
        dimension_numbers=("NCHW", "OIHW", "NCHW"))
    y_ref = jnp.maximum(y_ref + b_ref.reshape(1, -1, 1, 1), 0.0)

    assert y.shape == (B, OUT_CH, H, W)
    assert np.allclose(np.asarray(y), np.asarray(y_ref), atol=1e-4, rtol=1e-4)
    assert np.allclose(np.asarray(q_new), np.asarray(r_ref), atol=1e-5, rtol=1e-5)
    assert np.allclose(np.asarray(xj_new), np.asarray(xj_hat + q_buf),
                       atol=1e-5, rtol=1e-5)
    print("KERNEL_OK")
</pallas_src>

<mosaic_0001>
module attributes {stable_mosaic.version = 11 : i64} {
  func.func @conv_bias_relu_kernel(%arg0: i32, %arg1: memref<8x40xf32, #tpu.memory_space<vmem>>, %arg2: memref<2x40x256xf32, #tpu.memory_space<vmem>>, %arg3: memref<2x8x256xf32, #tpu.memory_space<vmem>>) attributes {dimension_semantics = [#tpu.dimension_semantics<arbitrary>], iteration_bounds = array<i64: 1>, scalar_prefetch = 0 : i64, scratch_operands = 0 : i64, tpu.core_type = #tpu.core_type<tc>, window_params = [{pipeline_mode = #tpu.pipeline_mode<synchronous>, transform_indices = @transform_0, window_bounds = array<i64: 8, 40>}, {pipeline_mode = #tpu.pipeline_mode<synchronous>, transform_indices = @transform_1, window_bounds = array<i64: 2, 40, 256>}, {pipeline_mode = #tpu.pipeline_mode<synchronous>, transform_indices = @transform_2, window_bounds = array<i64: 2, 8, 256>}]} {
    %c0 = arith.constant 0 : index
    %c0_0 = arith.constant 0 : index
    %0 = vector.load %arg1[%c0, %c0_0] : memref<8x40xf32, #tpu.memory_space<vmem>>, vector<8x40xf32>
    %c0_1 = arith.constant 0 : index
    %c0_2 = arith.constant 0 : index
    %c0_3 = arith.constant 0 : index
    %1 = vector.load %arg2[%c0_1, %c0_2, %c0_3] : memref<2x40x256xf32, #tpu.memory_space<vmem>>, vector<1x40x256xf32>
    %2 = vector.shape_cast %1 : vector<1x40x256xf32> to vector<40x256xf32>
    %cst = arith.constant dense<0.000000e+00> : vector<8x256xf32>
    %3 = tpu.matmul %0, %2, %cst {dimension_numbers = #tpu.dot_dimension_numbers<[1], [0], [0], [1], [0, 0, 1, 1], [], []>} : vector<8x40xf32>, vector<40x256xf32>, vector<8x256xf32> -> vector<8x256xf32>
    %cst_4 = arith.constant 0.000000e+00 : f32
    %4 = vector.broadcast %cst_4 : f32 to vector<8x256xf32>
    %5 = arith.maximumf %3, %4 : vector<8x256xf32>
    %c0_5 = arith.constant 0 : index
    %c0_6 = arith.constant 0 : index
    %c0_7 = arith.constant 0 : index
    %6 = vector.load %arg3[%c0_5, %c0_6, %c0_7] : memref<2x8x256xf32, #tpu.memory_space<vmem>>, vector<1x8x256xf32>
    %7 = vector.shape_cast %6 : vector<1x8x256xf32> to vector<8x256xf32>
    %8 = vector.shape_cast %5 : vector<8x256xf32> to vector<1x8x256xf32>
    tpu.vector_store %arg3[%c0_5, %c0_6, %c0_7], %8 {strides = array<i32>} : memref<2x8x256xf32, #tpu.memory_space<vmem>>, vector<1x8x256xf32>,
    %c1 = arith.constant 1 : index
    %c0_8 = arith.constant 0 : index
    %c0_9 = arith.constant 0 : index
    %9 = vector.load %arg2[%c1, %c0_8, %c0_9] : memref<2x40x256xf32, #tpu.memory_space<vmem>>, vector<1x40x256xf32>
    %10 = vector.shape_cast %9 : vector<1x40x256xf32> to vector<40x256xf32>
    %cst_10 = arith.constant dense<0.000000e+00> : vector<8x256xf32>
    %11 = tpu.matmul %0, %10, %cst_10 {dimension_numbers = #tpu.dot_dimension_numbers<[1], [0], [0], [1], [0, 0, 1, 1], [], []>} : vector<8x40xf32>, vector<40x256xf32>, vector<8x256xf32> -> vector<8x256xf32>
    %cst_11 = arith.constant 0.000000e+00 : f32
    %12 = vector.broadcast %cst_11 : f32 to vector<8x256xf32>
    %13 = arith.maximumf %11, %12 : vector<8x256xf32>
    %c1_12 = arith.constant 1 : index
    %c0_13 = arith.constant 0 : index
    %c0_14 = arith.constant 0 : index
    %14 = vector.load %arg3[%c1_12, %c0_13, %c0_14] : memref<2x8x256xf32, #tpu.memory_space<vmem>>, vector<1x8x256xf32>
    %15 = vector.shape_cast %14 : vector<1x8x256xf32> to vector<8x256xf32>
    %16 = vector.shape_cast %13 : vector<8x256xf32> to vector<1x8x256xf32>
    tpu.vector_store %arg3[%c1_12, %c0_13, %c0_14], %16 {strides = array<i32>} : memref<2x8x256xf32, #tpu.memory_space<vmem>>, vector<1x8x256xf32>,
    return
  }
  func.func @transform_0(%arg0: i32) -> (i32, i32) {
    %c0_i32 = arith.constant 0 : i32
    %c0_i32_0 = arith.constant 0 : i32
    %c0_i32_1 = arith.constant 0 : i32
    return %c0_i32, %c0_i32_0 : i32, i32
  }
  func.func @transform_1(%arg0: i32) -> (i32, i32, i32) {
    %c0_i32 = arith.constant 0 : i32
    %c0_i32_0 = arith.constant 0 : i32
    %c0_i32_1 = arith.constant 0 : i32
    %c0_i32_2 = arith.constant 0 : i32
    return %c0_i32, %c0_i32_0, %c0_i32_1 : i32, i32, i32
  }
  func.func @transform_2(%arg0: i32) -> (i32, i32, i32) {
    %c0_i32 = arith.constant 0 : i32
    %c0_i32_0 = arith.constant 0 : i32
    %c0_i32_1 = arith.constant 0 : i32
    %c0_i32_2 = arith.constant 0 : i32
    return %c0_i32, %c0_i32_0, %c0_i32_1 : i32, i32, i32
  }
}

</mosaic_0001>

<llo_original>
// kernel: gossip_data_parallel_forward.1
$region0: #{gossip_data_parallel_forward.1}
  #allocation0 [shape = 'u32[]', space=smem, size = 0x4, offset = 0x4, fixed_abs, tag = 'smem constant byte address 0x4 - core index']
  #allocation1 [shape = 'u32[144,128]{1,0:T(1,128)}', space=vmem, size = 0x12000, scoped, tag = 'internal scratch']
  %s0 = inlined_call_operand.vmem [shape: f32[8,40], index: 0, kind: input, shape index: {}]
  %s1 = inlined_call_operand.vmem [shape: f32[2,40,256], index: 1, kind: input, shape index: {}]
  %s2 = inlined_call_operand.vmem [shape: f32[2,8,256], index: 2, kind: output, shape index: {}]
  %s3 = sld [smem:[#allocation0]]
  $region18: #{gossip_data_parallel_forward.1} parent=0
    _
  %s5 = ssub.s32 1, %s3
  %s6 = scalar_select 0, %s5, %s3
  // Predicated region
  $region2: #{gossip_data_parallel_forward.1} parent=0 // pred_check
    _
  $region3: #{gossip_data_parallel_forward.1} parent=0 // pred_check_branch
    %8 = sbr.rel (0) target = $region5
  $region4: #{gossip_data_parallel_forward.1} parent=0 // pred_region
    _
  $region5: #{gossip_data_parallel_forward.1} parent=0 // pred_fallthru
    _
  // Predicated region
  $region6: #{gossip_data_parallel_forward.1} parent=0 // pred_check
    _
  $region7: #{gossip_data_parallel_forward.1} parent=0 // pred_check_branch
    %10 = sbr.rel (0) target = $region9
  $region8: #{gossip_data_parallel_forward.1} parent=0 // pred_region
    _
  $region9: #{gossip_data_parallel_forward.1} parent=0 // pred_fallthru
    _
  %v11 = vld [vmem:[%s0] sm:$0xff]
  %v12 = vld [vmem:[%s1] sm:$0xff]
  %v13 = vld [vmem:[%s1 + $0x8] sm:$0xff]
  %v14 = vld [vmem:[%s1 + $0x10] sm:$0xff]
  %v15 = vld [vmem:[%s1 + $0x18] sm:$0xff]
  %v16 = vld [vmem:[%s1 + $0x20] sm:$0xff]
  %v17 = vld [vmem:[%s1 + $0x28] sm:$0xff]
  %v18 = vld [vmem:[%s1 + $0x30] sm:$0xff]
  %v19 = vld [vmem:[%s1 + $0x38] sm:$0xff]
  %v20 = vld [vmem:[%s1 + $0x40] sm:$0xff]
  %v21 = vld [vmem:[%s1 + $0x48] sm:$0xff]
  %vm22 = vcmask 326656
  %v24 = vsel %vm22, %v11, 0
  %26 = vmatprep.subr.mxu0 %v13
  %27 = vmatpush1.msra.mxu0 %v12
  %28 = vmatprep.subr.mxu0 %v15
  %29 = vmatpush1.msra.mxu0 %v14
  %30 = vmatprep.subr.mxu0 %v17
  %31 = vmatpush1.msra.mxu0 %v16
  %32 = vmatprep.subr.mxu0 %v19
  %33 = vmatpush1.msra.mxu0 %v18
  %34 = vmatprep.subr.mxu0 %v21
  %35 = vmatpush1.msra.mxu0 %v20
  %36 = vmatprep.subr.mxu0 0.0
  %37 = vmatpush1.msra.mxu0 0.0
  %38 = vmatprep.subr.mxu0 0.0
  %39 = vmatpush1.msra.mxu0 0.0
  %40 = vmatprep.subr.mxu0 0.0
  %41 = vmatpush1.msra.mxu0 0.0
  %42 = vmatprep.subr.mxu0 0.0
  %43 = vmatpush1.msra.mxu0 0.0
  %44 = vmatprep.subr.mxu0 0.0
  %45 = vmatpush1.msra.mxu0 0.0
  %46 = vmatprep.subr.mxu0 0.0
  %47 = vmatpush1.msra.mxu0 0.0
  %48 = vmatprep.subr.mxu0 0.0
  %49 = vmatpush1.msra.mxu0 0.0
  %50 = vmatprep.subr.mxu0 0.0
  %51 = vmatpush1.msra.mxu0 0.0
  %52 = vmatprep.subr.mxu0 0.0
  %53 = vmatpush1.msra.mxu0 0.0
  %54 = vmatprep.subr.mxu0 0.0
  %55 = vmatpush1.msra.mxu0 0.0
  %56 = vmatprep.subr.mxu0 0.0
  %57 = vmatpush1.msra.mxu0 0.0
  %58 = vmatprep.subr.mxu0 0.0
  %59 = vmatpush1.msra.mxu0 0.0
  %60 = vmatprep.subr.mxu0 0.0
  %61 = vmatpush1.msra.mxu0 0.0
  %62 = vmatprep.subr.mxu0 0.0
  %63 = vmatpush1.msra.mxu0 0.0
  %64 = vmatprep.subr.mxu0 0.0
  %65 = vmatpush1.msra.mxu0 0.0
  %66 = vmatprep.subr.mxu0 0.0
  %67 = vmatpush1.msra.mxu0 0.0
  %68 = vmatprep.subr.mxu0 0.0
  %69 = vmatpush1.msra.mxu0 0.0
  %70 = vmatprep.subr.mxu0 0.0
  %71 = vmatpush1.msra.mxu0 0.0
  %72 = vmatprep.subr.mxu0 0.0
  %73 = vmatpush1.msra.mxu0 0.0
  %74 = vmatprep.subr.mxu0 0.0
  %75 = vmatpush1.msra.mxu0 0.0
  %76 = vmatprep.subr.mxu0 0.0
  %77 = vmatpush1.msra.mxu0 0.0
  %78 = vmatprep.subr.mxu0 0.0
  %79 = vmatpush1.msra.mxu0 0.0
  %80 = vmatprep.subr.mxu0 0.0
  %81 = vmatpush1.msra.mxu0 0.0
  %82 = vmatprep.subr.mxu0 0.0
  %83 = vmatpush1.msra.mxu0 0.0
  %84 = vmatprep.subr.mxu0 0.0
  %85 = vmatpush1.msra.mxu0 0.0
  %86 = vmatprep.subr.mxu0 0.0
  %87 = vmatpush1.msra.mxu0 0.0
  %88 = vmatprep.subr.mxu0 0.0
  %89 = vmatpush1.msra.mxu0 0.0
  %90 = vmatprep.mubr.f32.mxu0 0.0
  %91 = vmatmul.mubr.f32.gmra.mrb[0].mxu0 %v24
  %v92 = vpop.f32.mrb[0].mxu0
  %v93 = vadd.f32 0.0, %v92
  %v94 = vpop.f32.mrb[0].mxu0
  %v95 = vadd.f32 0.0, %v94
  %96 = vdwg.mxu0
  %v97 = vmax.f32 %v93, 0.0
  %v98 = vmax.f32 %v95, 0.0
  %99 = vst [vmem:[%s2] sm:$0xff] %v97
  %100 = vst [vmem:[%s2 + $0x8] sm:$0xff] %v98
  %s101 = scalar_lea.vmem %s1, 80
  %v102 = vld [vmem:[%s101] sm:$0xff]
  %v103 = vld [vmem:[%s101 + $0x8] sm:$0xff]
  %v104 = vld [vmem:[%s101 + $0x10] sm:$0xff]
  %v105 = vld [vmem:[%s101 + $0x18] sm:$0xff]
  %v106 = vld [vmem:[%s101 + $0x20] sm:$0xff]
  %v107 = vld [vmem:[%s101 + $0x28] sm:$0xff]
  %v108 = vld [vmem:[%s101 + $0x30] sm:$0xff]
  %v109 = vld [vmem:[%s101 + $0x38] sm:$0xff]
  %v110 = vld [vmem:[%s101 + $0x40] sm:$0xff]
  %v111 = vld [vmem:[%s101 + $0x48] sm:$0xff]
  %112 = vmatprep.subr.mxu0 %v103
  %113 = vmatpush1.msra.mxu0 %v102
  %114 = vmatprep.subr.mxu0 %v105
  %115 = vmatpush1.msra.mxu0 %v104
  %116 = vmatprep.subr.mxu0 %v107
  %117 = vmatpush1.msra.mxu0 %v106
  %118 = vmatprep.subr.mxu0 %v109
  %119 = vmatpush1.msra.mxu0 %v108
  %120 = vmatprep.subr.mxu0 %v111
  %121 = vmatpush1.msra.mxu0 %v110
  %122 = vmatprep.subr.mxu0 0.0
  %123 = vmatpush1.msra.mxu0 0.0
  %124 = vmatprep.subr.mxu0 0.0
  %125 = vmatpush1.msra.mxu0 0.0
  %126 = vmatprep.subr.mxu0 0.0
  %127 = vmatpush1.msra.mxu0 0.0
  %128 = vmatprep.subr.mxu0 0.0
  %129 = vmatpush1.msra.mxu0 0.0
  %130 = vmatprep.subr.mxu0 0.0
  %131 = vmatpush1.msra.mxu0 0.0
  %132 = vmatprep.subr.mxu0 0.0
  %133 = vmatpush1.msra.mxu0 0.0
  %134 = vmatprep.subr.mxu0 0.0
  %135 = vmatpush1.msra.mxu0 0.0
  %136 = vmatprep.subr.mxu0 0.0
  %137 = vmatpush1.msra.mxu0 0.0
  %138 = vmatprep.subr.mxu0 0.0
  %139 = vmatpush1.msra.mxu0 0.0
  %140 = vmatprep.subr.mxu0 0.0
  %141 = vmatpush1.msra.mxu0 0.0
  %142 = vmatprep.subr.mxu0 0.0
  %143 = vmatpush1.msra.mxu0 0.0
  %144 = vmatprep.subr.mxu0 0.0
  %145 = vmatpush1.msra.mxu0 0.0
  %146 = vmatprep.subr.mxu0 0.0
  %147 = vmatpush1.msra.mxu0 0.0
  %148 = vmatprep.subr.mxu0 0.0
  %149 = vmatpush1.msra.mxu0 0.0
  %150 = vmatprep.subr.mxu0 0.0
  %151 = vmatpush1.msra.mxu0 0.0
  %152 = vmatprep.subr.mxu0 0.0
  %153 = vmatpush1.msra.mxu0 0.0
  %154 = vmatprep.subr.mxu0 0.0
  %155 = vmatpush1.msra.mxu0 0.0
  %156 = vmatprep.subr.mxu0 0.0
  %157 = vmatpush1.msra.mxu0 0.0
  %158 = vmatprep.subr.mxu0 0.0
  %159 = vmatpush1.msra.mxu0 0.0
  %160 = vmatprep.subr.mxu0 0.0
  %161 = vmatpush1.msra.mxu0 0.0
  %162 = vmatprep.subr.mxu0 0.0
  %163 = vmatpush1.msra.mxu0 0.0
  %164 = vmatprep.subr.mxu0 0.0
  %165 = vmatpush1.msra.mxu0 0.0
  %166 = vmatprep.subr.mxu0 0.0
  %167 = vmatpush1.msra.mxu0 0.0
  %168 = vmatprep.subr.mxu0 0.0
  %169 = vmatpush1.msra.mxu0 0.0
  %170 = vmatprep.subr.mxu0 0.0
  %171 = vmatpush1.msra.mxu0 0.0
  %172 = vmatprep.subr.mxu0 0.0
  %173 = vmatpush1.msra.mxu0 0.0
  %174 = vmatprep.subr.mxu0 0.0
  %175 = vmatpush1.msra.mxu0 0.0
  %176 = vmatprep.mubr.f32.mxu0 0.0
  %177 = vmatmul.mubr.f32.gmra.mrb[0].mxu0 %v24
  %v178 = vpop.f32.mrb[0].mxu0
  %v179 = vadd.f32 0.0, %v178
  %v180 = vpop.f32.mrb[0].mxu0
  %v181 = vadd.f32 0.0, %v180
  %182 = vdwg.mxu0
  %v183 = vmax.f32 %v179, 0.0
  %v184 = vmax.f32 %v181, 0.0
  %s185 = scalar_lea.vmem %s2, 16
  %186 = vst [vmem:[%s185] sm:$0xff] %v183
  %187 = vst [vmem:[%s185 + $0x8] sm:$0xff] %v184
  // Predicated region
  $region10: #{gossip_data_parallel_forward.1} parent=0 // pred_check
    _
  $region11: #{gossip_data_parallel_forward.1} parent=0 // pred_check_branch
    %189 = sbr.rel (0) target = $region13
  $region12: #{gossip_data_parallel_forward.1} parent=0 // pred_region
    _
  $region13: #{gossip_data_parallel_forward.1} parent=0 // pred_fallthru
    _
  // Predicated region
  $region14: #{gossip_data_parallel_forward.1} parent=0 // pred_check
    _
  $region15: #{gossip_data_parallel_forward.1} parent=0 // pred_check_branch
    %191 = sbr.rel (0) target = $region17
  $region16: #{gossip_data_parallel_forward.1} parent=0 // pred_region
    _
  $region17: #{gossip_data_parallel_forward.1} parent=0 // pred_fallthru
    _

</llo_original>
